<compile_context>
chip_gen: v5e
topology: v5e:2x2
jax: 0.10.0
libtpu: 0.0.40
codegen_flags: <defaults>
</compile_context>

<pallas_src>
import functools

import jax
import jax.numpy as jnp
from jax.experimental import pallas as pl
from jax.experimental.pallas import tpu as pltpu

LOG_STD_MAX = 2.0
LOG_STD_MIN = -20.0

HEAD_PAD = 128   # per-head lane padding (mu block / log_std block)
OUT_PAD = 128    # packed output width: lanes [0,A)=action, lane A=logp


def _actor_kernel(*refs, act_dim, act_limit, deterministic, with_logprob,
                  out_pad):
    if deterministic:
        (obs_ref, skill_ref, w1o_ref, w1s_ref, b1_ref,
         w2_ref, b2_ref, wh_ref, bh_ref, out_ref) = refs
        eps = None
    else:
        (obs_ref, skill_ref, w1o_ref, w1s_ref, b1_ref,
         w2_ref, b2_ref, wh_ref, bh_ref, eps_ref, out_ref) = refs
        eps = eps_ref[...]                       # (tb, OUT_PAD); noise in lanes [0,A)

    # --- MLP trunk: Linear -> ReLU -> Linear -> ReLU (activation == output_activation)
    h1 = (jnp.dot(obs_ref[...], w1o_ref[...], preferred_element_type=jnp.float32)
          + jnp.dot(skill_ref[...], w1s_ref[...], preferred_element_type=jnp.float32)
          + b1_ref[...])
    h1 = jnp.maximum(h1, 0.0)
    h2 = jnp.dot(h1, w2_ref[...], preferred_element_type=jnp.float32) + b2_ref[...]
    h2 = jnp.maximum(h2, 0.0)

    # --- fused heads: one matmul, mu in lanes [0,128), log_std in lanes [128,256)
    heads = jnp.dot(h2, wh_ref[...], preferred_element_type=jnp.float32) + bh_ref[...]
    mu = heads[:, :HEAD_PAD]                      # mu lives in lanes [0, A); pad lanes = 0
    log_std = heads[:, HEAD_PAD:]                 # log_std in lanes [0, A); pad lanes = 0
    log_std = jnp.clip(log_std, LOG_STD_MIN, LOG_STD_MAX)
    std = jnp.exp(log_std)

    # rsample (reparameterization): pi = mu + std * eps
    if deterministic:
        pi = mu
    else:
        pi = mu + std * eps

    tb = out_ref.shape[0]
    col = jax.lax.broadcasted_iota(jnp.int32, (tb, out_pad), 1)
    valid = col < act_dim                         # real action lanes

    act = act_limit * jnp.tanh(pi)

    if with_logprob:
        # Normal(mu, std).log_prob(pi) with z = (pi - mu)/std == eps (0 if deterministic).
        if deterministic:
            log_prob = -log_std - 0.5 * jnp.log(2.0 * jnp.pi)
        else:
            log_prob = -0.5 * eps * eps - log_std - 0.5 * jnp.log(2.0 * jnp.pi)
        # tanh-squash correction: 2*(log 2 - pi - softplus(-2*pi)); stable softplus.
        t = -2.0 * pi
        softplus = jnp.maximum(t, 0.0) + jnp.log1p(jnp.exp(-jnp.abs(t)))
        corr = 2.0 * (jnp.log(2.0) - pi - softplus)
        # single masked per-row reduction over the A real lanes
        logp = jnp.sum(jnp.where(valid, log_prob - corr, 0.0),
                       axis=-1, keepdims=True)
        out_ref[...] = jnp.where(valid, act,
                                 jnp.where(col == act_dim, logp, 0.0))
    else:
        out_ref[...] = jnp.where(valid, act, 0.0)


def pack_params(params, obs_dim, act_dim):
    """One-time parameter prep: split w1 by input (obs/skill), fuse + lane-pad heads."""
    w1 = params["w1"].astype(jnp.float32)
    h_last = params["w2"].shape[1]
    whead = jnp.zeros((h_last, 2 * HEAD_PAD), jnp.float32)
    whead = whead.at[:, :act_dim].set(params["wmu"])
    whead = whead.at[:, HEAD_PAD:HEAD_PAD + act_dim].set(params["wls"])
    bhead = jnp.zeros((1, 2 * HEAD_PAD), jnp.float32)
    bhead = bhead.at[:, :act_dim].set(params["bmu"])
    bhead = bhead.at[:, HEAD_PAD:HEAD_PAD + act_dim].set(params["bls"])
    return dict(
        w1o=w1[:obs_dim], w1s=w1[obs_dim:],
        b1=params["b1"].astype(jnp.float32),
        w2=params["w2"].astype(jnp.float32),
        b2=params["b2"].astype(jnp.float32),
        whead=whead, bhead=bhead, act_dim=int(act_dim))


def squashed_gaussian_actor(obs, skill, packed, act_limit, eps=None,
                            deterministic=False, with_logprob=True):
    obs = obs.astype(jnp.float32)
    skill = skill.astype(jnp.float32)
    B = obs.shape[0]
    act_dim = packed["act_dim"]
    assert act_dim + 1 <= OUT_PAD and act_dim <= HEAD_PAD

    tile_b = B if B <= 256 else 256
    assert B % tile_b == 0, "batch must be a multiple of the batch tile"
    grid = (B // tile_b,)

    def tiled(shape):
        nd = len(shape)
        return pl.BlockSpec((tile_b,) + tuple(shape[1:]),
                            lambda i, _nd=nd: (i,) + (0,) * (_nd - 1))

    def full(shape):
        nd = len(shape)
        return pl.BlockSpec(tuple(shape), lambda i, _nd=nd: (0,) * _nd)

    args = [obs, skill, packed["w1o"], packed["w1s"], packed["b1"],
            packed["w2"], packed["b2"], packed["whead"], packed["bhead"]]
    in_specs = [tiled(obs.shape), tiled(skill.shape)] + \
               [full(a.shape) for a in args[2:]]

    if not deterministic:
        assert eps is not None and eps.shape == (B, act_dim)
        # lane-dense eps input: noise in lanes [0, A), zeros elsewhere
        eps_pad = jnp.zeros((B, OUT_PAD), jnp.float32).at[:, :act_dim].set(
            eps.astype(jnp.float32))
        args.append(eps_pad)
        in_specs.append(tiled(eps_pad.shape))

    kernel = functools.partial(
        _actor_kernel, act_dim=act_dim, act_limit=float(act_limit),
        deterministic=deterministic, with_logprob=with_logprob,
        out_pad=OUT_PAD)

    out = pl.pallas_call(
        kernel,
        out_shape=jax.ShapeDtypeStruct((B, OUT_PAD), jnp.float32),
        grid=grid,
        in_specs=in_specs,
        out_specs=tiled((B, OUT_PAD)),
        compiler_params=pltpu.CompilerParams(
            dimension_semantics=("parallel",)),
    )(*args)

    pi_action = out[:, :act_dim]
    logp_pi = out[:, act_dim] if with_logprob else None
    return pi_action, logp_pi


def init_params(key, obs_dim, skill_dim, act_dim, hidden_sizes):
    """Deterministic synthetic parameter init (matches nn.Linear shapes, W stored as (in,out))."""
    sizes = [obs_dim + skill_dim] + list(hidden_sizes)
    keys = jax.random.split(key, 2 * (len(sizes) - 1) + 4)
    p = {}
    ki = 0
    for j, name in enumerate(["1", "2"]):
        fan_in = sizes[j]
        bound = 1.0 / jnp.sqrt(fan_in)
        p["w" + name] = jax.random.uniform(
            keys[ki], (sizes[j], sizes[j + 1]), jnp.float32, -bound, bound); ki += 1
        p["b" + name] = jax.random.uniform(
            keys[ki], (1, sizes[j + 1]), jnp.float32, -bound, bound); ki += 1
    fan_in = hidden_sizes[-1]
    bound = 1.0 / jnp.sqrt(fan_in)
    for name in ["mu", "ls"]:
        p["w" + name] = jax.random.uniform(
            keys[ki], (hidden_sizes[-1], act_dim), jnp.float32, -bound, bound); ki += 1
        p["b" + name] = jax.random.uniform(
            keys[ki], (1, act_dim), jnp.float32, -bound, bound); ki += 1
    return p


if __name__ == "__main__":
    # Small shapes consistent with the module's forward pass.
    B, OBS_DIM, SKILL_DIM, ACT_DIM = 8, 24, 8, 8
    HIDDEN = (32, 32)
    ACT_LIMIT = 1.0

    key = jax.random.PRNGKey(0)
    k_obs, k_skill, k_eps, k_params = jax.random.split(key, 4)

    obs = jax.random.normal(k_obs, (B, OBS_DIM), jnp.float32)
    skill = jax.random.normal(k_skill, (B, SKILL_DIM), jnp.float32)
    eps = jax.random.normal(k_eps, (B, ACT_DIM), jnp.float32)  # rsample noise (host-side)

    params = init_params(k_params, OBS_DIM, SKILL_DIM, ACT_DIM, HIDDEN)
    packed = pack_params(params, OBS_DIM, ACT_DIM)

    # stochastic path with log-prob
    pi_action, logp_pi = squashed_gaussian_actor(
        obs, skill, packed, ACT_LIMIT, eps=eps,
        deterministic=False, with_logprob=True)
    jax.block_until_ready((pi_action, logp_pi))

    # deterministic / no-logprob path: no eps DMA, no log-prob tail
    det_action, det_logp = squashed_gaussian_actor(
        obs, skill, packed, ACT_LIMIT, deterministic=True, with_logprob=False)
    jax.block_until_ready(det_action)

    assert pi_action.shape == (B, ACT_DIM)
    assert logp_pi.shape == (B,)
    assert det_action.shape == (B, ACT_DIM) and det_logp is None
    assert bool(jnp.all(jnp.isfinite(pi_action)))
    assert bool(jnp.all(jnp.isfinite(logp_pi)))
    assert bool(jnp.all(jnp.abs(pi_action) <= ACT_LIMIT + 1e-6))
    assert bool(jnp.all(jnp.abs(det_action) <= ACT_LIMIT + 1e-6))
    print("KERNEL_OK")
</pallas_src>

<mosaic_0001>
module attributes {stable_mosaic.version = 11 : i64} {
  func.func @_actor_kernel(%arg0: i32, %arg1: memref<8x24xf32, #tpu.memory_space<vmem>>, %arg2: memref<8x8xf32, #tpu.memory_space<vmem>>, %arg3: memref<24x32xf32, #tpu.memory_space<vmem>>, %arg4: memref<8x32xf32, #tpu.memory_space<vmem>>, %arg5: memref<1x32xf32, #tpu.memory_space<vmem>>, %arg6: memref<32x32xf32, #tpu.memory_space<vmem>>, %arg7: memref<1x32xf32, #tpu.memory_space<vmem>>, %arg8: memref<32x256xf32, #tpu.memory_space<vmem>>, %arg9: memref<1x256xf32, #tpu.memory_space<vmem>>, %arg10: memref<8x128xf32, #tpu.memory_space<vmem>>, %arg11: memref<8x128xf32, #tpu.memory_space<vmem>>) attributes {dimension_semantics = [#tpu.dimension_semantics<parallel>], iteration_bounds = array<i64: 1>, scalar_prefetch = 0 : i64, scratch_operands = 0 : i64, tpu.core_type = #tpu.core_type<tc>, window_params = [{transform_indices = @transform_0, window_bounds = array<i64: 8, 24>}, {transform_indices = @transform_1, window_bounds = array<i64: 8, 8>}, {pipeline_mode = #tpu.pipeline_mode<synchronous>, transform_indices = @transform_2, window_bounds = array<i64: 24, 32>}, {pipeline_mode = #tpu.pipeline_mode<synchronous>, transform_indices = @transform_3, window_bounds = array<i64: 8, 32>}, {pipeline_mode = #tpu.pipeline_mode<synchronous>, transform_indices = @transform_4, window_bounds = array<i64: 1, 32>}, {pipeline_mode = #tpu.pipeline_mode<synchronous>, transform_indices = @transform_5, window_bounds = array<i64: 32, 32>}, {pipeline_mode = #tpu.pipeline_mode<synchronous>, transform_indices = @transform_6, window_bounds = array<i64: 1, 32>}, {pipeline_mode = #tpu.pipeline_mode<synchronous>, transform_indices = @transform_7, window_bounds = array<i64: 32, 256>}, {pipeline_mode = #tpu.pipeline_mode<synchronous>, transform_indices = @transform_8, window_bounds = array<i64: 1, 256>}, {transform_indices = @transform_9, window_bounds = array<i64: 8, 128>}, {transform_indices = @transform_10, window_bounds = array<i64: 8, 128>}]} {
    %c0 = arith.constant 0 : index
    %c0_0 = arith.constant 0 : index
    %0 = vector.load %arg10[%c0, %c0_0] : memref<8x128xf32, #tpu.memory_space<vmem>>, vector<8x128xf32>
    %c0_1 = arith.constant 0 : index
    %c0_2 = arith.constant 0 : index
    %1 = vector.load %arg1[%c0_1, %c0_2] : memref<8x24xf32, #tpu.memory_space<vmem>>, vector<8x24xf32>
    %c0_3 = arith.constant 0 : index
    %c0_4 = arith.constant 0 : index
    %2 = vector.load %arg3[%c0_3, %c0_4] : memref<24x32xf32, #tpu.memory_space<vmem>>, vector<24x32xf32>
    %cst = arith.constant dense<0.000000e+00> : vector<8x32xf32>
    %3 = tpu.matmul %1, %2, %cst {dimension_numbers = #tpu.dot_dimension_numbers<[1], [0], [0], [1], [0, 0, 1, 1], [], []>} : vector<8x24xf32>, vector<24x32xf32>, vector<8x32xf32> -> vector<8x32xf32>
    %c0_5 = arith.constant 0 : index
    %c0_6 = arith.constant 0 : index
    %4 = vector.load %arg2[%c0_5, %c0_6] : memref<8x8xf32, #tpu.memory_space<vmem>>, vector<8x8xf32>
    %c0_7 = arith.constant 0 : index
    %c0_8 = arith.constant 0 : index
    %5 = vector.load %arg4[%c0_7, %c0_8] : memref<8x32xf32, #tpu.memory_space<vmem>>, vector<8x32xf32>
    %cst_9 = arith.constant dense<0.000000e+00> : vector<8x32xf32>
    %6 = tpu.matmul %4, %5, %cst_9 {dimension_numbers = #tpu.dot_dimension_numbers<[1], [0], [0], [1], [0, 0, 1, 1], [], []>} : vector<8x8xf32>, vector<8x32xf32>, vector<8x32xf32> -> vector<8x32xf32>
    %7 = arith.addf %3, %6 : vector<8x32xf32>
    %c0_10 = arith.constant 0 : index
    %c0_11 = arith.constant 0 : index
    %8 = vector.load %arg5[%c0_10, %c0_11] : memref<1x32xf32, #tpu.memory_space<vmem>>, vector<1x32xf32>
    %9 = vector.broadcast %8 : vector<1x32xf32> to vector<8x32xf32>
    %10 = arith.addf %7, %9 : vector<8x32xf32>
    %cst_12 = arith.constant 0.000000e+00 : f32
    %11 = vector.broadcast %cst_12 : f32 to vector<8x32xf32>
    %12 = arith.maximumf %10, %11 : vector<8x32xf32>
    %c0_13 = arith.constant 0 : index
    %c0_14 = arith.constant 0 : index
    %13 = vector.load %arg6[%c0_13, %c0_14] : memref<32x32xf32, #tpu.memory_space<vmem>>, vector<32x32xf32>
    %cst_15 = arith.constant dense<0.000000e+00> : vector<8x32xf32>
    %14 = tpu.matmul %12, %13, %cst_15 {dimension_numbers = #tpu.dot_dimension_numbers<[1], [0], [0], [1], [0, 0, 1, 1], [], []>} : vector<8x32xf32>, vector<32x32xf32>, vector<8x32xf32> -> vector<8x32xf32>
    %c0_16 = arith.constant 0 : index
    %c0_17 = arith.constant 0 : index
    %15 = vector.load %arg7[%c0_16, %c0_17] : memref<1x32xf32, #tpu.memory_space<vmem>>, vector<1x32xf32>
    %16 = vector.broadcast %15 : vector<1x32xf32> to vector<8x32xf32>
    %17 = arith.addf %14, %16 : vector<8x32xf32>
    %cst_18 = arith.constant 0.000000e+00 : f32
    %18 = vector.broadcast %cst_18 : f32 to vector<8x32xf32>
    %19 = arith.maximumf %17, %18 : vector<8x32xf32>
    %c0_19 = arith.constant 0 : index
    %c0_20 = arith.constant 0 : index
    %20 = vector.load %arg8[%c0_19, %c0_20] : memref<32x256xf32, #tpu.memory_space<vmem>>, vector<32x256xf32>
    %cst_21 = arith.constant dense<0.000000e+00> : vector<8x256xf32>
    %21 = tpu.matmul %19, %20, %cst_21 {dimension_numbers = #tpu.dot_dimension_numbers<[1], [0], [0], [1], [0, 0, 1, 1], [], []>} : vector<8x32xf32>, vector<32x256xf32>, vector<8x256xf32> -> vector<8x256xf32>
    %c0_22 = arith.constant 0 : index
    %c0_23 = arith.constant 0 : index
    %22 = vector.load %arg9[%c0_22, %c0_23] : memref<1x256xf32, #tpu.memory_space<vmem>>, vector<1x256xf32>
    %23 = vector.broadcast %22 : vector<1x256xf32> to vector<8x256xf32>
    %24 = arith.addf %21, %23 : vector<8x256xf32>
    %25 = vector.extract_strided_slice %24 {offsets = [0, 0], sizes = [8, 128], strides = [1, 1]} : vector<8x256xf32> to vector<8x128xf32>
    %26 = vector.extract_strided_slice %24 {offsets = [0, 128], sizes = [8, 128], strides = [1, 1]} : vector<8x256xf32> to vector<8x128xf32>
    %cst_24 = arith.constant -2.000000e+01 : f32
    %cst_25 = arith.constant 2.000000e+00 : f32
    %27 = vector.broadcast %cst_24 : f32 to vector<8x128xf32>
    %28 = arith.maximumf %27, %26 : vector<8x128xf32>
    %29 = vector.broadcast %cst_25 : f32 to vector<8x128xf32>
    %30 = arith.minimumf %29, %28 : vector<8x128xf32>
    %31 = math.exp %30 : vector<8x128xf32>
    %32 = arith.mulf %31, %0 : vector<8x128xf32>
    %33 = arith.addf %25, %32 : vector<8x128xf32>
    %34 = tpu.iota {dimensions = array<i32: 1>} : vector<8x128xi32>
    %c8_i32 = arith.constant 8 : i32
    %35 = vector.broadcast %c8_i32 : i32 to vector<8x128xi32>
    %36 = arith.cmpi slt, %34, %35 : vector<8x128xi32>
    %37 = math.tanh %33 : vector<8x128xf32>
    %cst_26 = arith.constant 1.000000e+00 : f32
    %38 = vector.broadcast %cst_26 : f32 to vector<8x128xf32>
    %39 = arith.mulf %38, %37 : vector<8x128xf32>
    %cst_27 = arith.constant -5.000000e-01 : f32
    %40 = vector.broadcast %cst_27 : f32 to vector<8x128xf32>
    %41 = arith.mulf %40, %0 : vector<8x128xf32>
    %42 = arith.mulf %41, %0 : vector<8x128xf32>
    %43 = arith.subf %42, %30 : vector<8x128xf32>
    %cst_28 = arith.constant 6.28318548 : f32
    %44 = math.log %cst_28 : f32
    %cst_29 = arith.constant 5.000000e-01 : f32
    %45 = arith.mulf %cst_29, %44 : f32
    %46 = vector.broadcast %45 : f32 to vector<8x128xf32>
    %47 = arith.subf %43, %46 : vector<8x128xf32>
    %cst_30 = arith.constant -2.000000e+00 : f32
    %48 = vector.broadcast %cst_30 : f32 to vector<8x128xf32>
    %49 = arith.mulf %48, %33 : vector<8x128xf32>
    %cst_31 = arith.constant 0.000000e+00 : f32
    %50 = vector.broadcast %cst_31 : f32 to vector<8x128xf32>
    %51 = arith.maximumf %49, %50 : vector<8x128xf32>
    %52 = math.absf %49 : vector<8x128xf32>
    %cst_32 = arith.constant 0.000000e+00 : f32
    %53 = vector.broadcast %cst_32 : f32 to vector<8x128xf32>
    %54 = arith.subf %53, %52 : vector<8x128xf32>
    %55 = math.exp %54 : vector<8x128xf32>
    %56 = math.log1p %55 : vector<8x128xf32>
    %57 = arith.addf %51, %56 : vector<8x128xf32>
    %cst_33 = arith.constant 2.000000e+00 : f32
    %58 = math.log %cst_33 : f32
    %59 = vector.broadcast %58 : f32 to vector<8x128xf32>
    %60 = arith.subf %59, %33 : vector<8x128xf32>
    %61 = arith.subf %60, %57 : vector<8x128xf32>
    %cst_34 = arith.constant 2.000000e+00 : f32
    %62 = vector.broadcast %cst_34 : f32 to vector<8x128xf32>
    %63 = arith.mulf %62, %61 : vector<8x128xf32>
    %64 = arith.subf %47, %63 : vector<8x128xf32>
    %cst_35 = arith.constant 0.000000e+00 : f32
    %65 = vector.broadcast %cst_35 : f32 to vector<8x128xf32>
    %66 = arith.select %36, %64, %65 : vector<8x128xi1>, vector<8x128xf32>
    %cst_36 = arith.constant dense<0.000000e+00> : vector<8xf32>
    %67 = vector.multi_reduction <add>, %66, %cst_36 [1] : vector<8x128xf32> to vector<8xf32>
    %68 = vector.shape_cast %67 : vector<8xf32> to vector<8x1xf32>
    %c8_i32_37 = arith.constant 8 : i32
    %69 = vector.broadcast %c8_i32_37 : i32 to vector<8x128xi32>
    %70 = arith.cmpi eq, %34, %69 : vector<8x128xi32>
    %cst_38 = arith.constant 0.000000e+00 : f32
    %71 = vector.shape_cast %68 : vector<8x1xf32> to vector<8x1xf32>
    %72 = vector.broadcast %71 : vector<8x1xf32> to vector<8x128xf32>
    %73 = vector.broadcast %cst_38 : f32 to vector<8x128xf32>
    %74 = arith.select %70, %72, %73 : vector<8x128xi1>, vector<8x128xf32>
    %75 = arith.select %36, %39, %74 : vector<8x128xi1>, vector<8x128xf32>
    %c0_39 = arith.constant 0 : index
    %c0_40 = arith.constant 0 : index
    %76 = vector.load %arg11[%c0_39, %c0_40] : memref<8x128xf32, #tpu.memory_space<vmem>>, vector<8x128xf32>
    tpu.vector_store %arg11[%c0_39, %c0_40], %75 {strides = array<i32>} : memref<8x128xf32, #tpu.memory_space<vmem>>, vector<8x128xf32>,
    return
  }
  func.func @transform_0(%arg0: i32) -> (i32, i32) {
    %c0_i32 = arith.constant 0 : i32
    %c0_i32_0 = arith.constant 0 : i32
    return %arg0, %c0_i32 : i32, i32
  }
  func.func @transform_1(%arg0: i32) -> (i32, i32) {
    %c0_i32 = arith.constant 0 : i32
    %c0_i32_0 = arith.constant 0 : i32
    return %arg0, %c0_i32 : i32, i32
  }
  func.func @transform_2(%arg0: i32) -> (i32, i32) {
    %c0_i32 = arith.constant 0 : i32
    %c0_i32_0 = arith.constant 0 : i32
    %c0_i32_1 = arith.constant 0 : i32
    return %c0_i32, %c0_i32_0 : i32, i32
  }
  func.func @transform_3(%arg0: i32) -> (i32, i32) {
    %c0_i32 = arith.constant 0 : i32
    %c0_i32_0 = arith.constant 0 : i32
    %c0_i32_1 = arith.constant 0 : i32
    return %c0_i32, %c0_i32_0 : i32, i32
  }
  func.func @transform_4(%arg0: i32) -> (i32, i32) {
    %c0_i32 = arith.constant 0 : i32
    %c0_i32_0 = arith.constant 0 : i32
    %c0_i32_1 = arith.constant 0 : i32
    return %c0_i32, %c0_i32_0 : i32, i32
  }
  func.func @transform_5(%arg0: i32) -> (i32, i32) {
    %c0_i32 = arith.constant 0 : i32
    %c0_i32_0 = arith.constant 0 : i32
    %c0_i32_1 = arith.constant 0 : i32
    return %c0_i32, %c0_i32_0 : i32, i32
  }
  func.func @transform_6(%arg0: i32) -> (i32, i32) {
    %c0_i32 = arith.constant 0 : i32
    %c0_i32_0 = arith.constant 0 : i32
    %c0_i32_1 = arith.constant 0 : i32
    return %c0_i32, %c0_i32_0 : i32, i32
  }
  func.func @transform_7(%arg0: i32) -> (i32, i32) {
    %c0_i32 = arith.constant 0 : i32
    %c0_i32_0 = arith.constant 0 : i32
    %c0_i32_1 = arith.constant 0 : i32
    return %c0_i32, %c0_i32_0 : i32, i32
  }
  func.func @transform_8(%arg0: i32) -> (i32, i32) {
    %c0_i32 = arith.constant 0 : i32
    %c0_i32_0 = arith.constant 0 : i32
    %c0_i32_1 = arith.constant 0 : i32
    return %c0_i32, %c0_i32_0 : i32, i32
  }
  func.func @transform_9(%arg0: i32) -> (i32, i32) {
    %c0_i32 = arith.constant 0 : i32
    %c0_i32_0 = arith.constant 0 : i32
    return %arg0, %c0_i32 : i32, i32
  }
  func.func @transform_10(%arg0: i32) -> (i32, i32) {
    %c0_i32 = arith.constant 0 : i32
    %c0_i32_0 = arith.constant 0 : i32
    return %arg0, %c0_i32 : i32, i32
  }
}

</mosaic_0001>

<llo_original>
// kernel: tpu_custom_call.1
$region0: #{tpu_custom_call.1}
  #allocation0 [shape = 'u32[]', space=smem, size = 0x4, offset = 0x4, fixed_abs, tag = 'smem constant byte address 0x4 - core index']
  #allocation1 [shape = 'u32[72,128]{1,0:T(1,128)}', space=vmem, size = 0x9000, scoped, tag = 'internal scratch']
  %s0 = inlined_call_operand.hbm [shape: f32[8,24], index: 0, kind: input, shape index: {}]
  %s1 = inlined_call_operand.hbm [shape: f32[8,8], index: 1, kind: input, shape index: {}]
  %s2 = inlined_call_operand.hbm [shape: f32[24,32], index: 2, kind: input, shape index: {}]
  %s3 = inlined_call_operand.hbm [shape: f32[8,32], index: 3, kind: input, shape index: {}]
  %s4 = inlined_call_operand.hbm [shape: f32[1,32], index: 4, kind: input, shape index: {}]
  %s5 = inlined_call_operand.hbm [shape: f32[32,32], index: 5, kind: input, shape index: {}]
  %s6 = inlined_call_operand.hbm [shape: f32[1,32], index: 6, kind: input, shape index: {}]
  %s7 = inlined_call_operand.hbm [shape: f32[32,256], index: 7, kind: input, shape index: {}]
  %s8 = inlined_call_operand.hbm [shape: f32[1,256], index: 8, kind: input, shape index: {}]
  %s9 = inlined_call_operand.vmem [shape: f32[8,128], index: 9, kind: input, shape index: {}]
  %s10 = inlined_call_operand.hbm [shape: f32[8,128], index: 10, kind: output, shape index: {}]
  %s11 = sld [smem:[#allocation0]]
  $region86: #{tpu_custom_call.1} parent=0
    _
  %s13 = ssub.s32 1, %s11
  %s14 = scalar_select 0, %s13, %s11
  $region1: #{tpu_custom_call.1} parent=0
    #allocation2 [shape = 'u8[4096]{0}', space=vmem, size = 0x1000, scoped, tag = 'input window, operand 0, single buffered']
    #allocation3 [shape = 's32[1]{0}', space=sflag, size = 0x4, scoped, tag = 'scoped memory for tpu_custom_call.1']
    #allocation4 [shape = 's32[1]{0}', space=sflag, size = 0x4, scoped, tag = 'scoped memory for tpu_custom_call.1']
    #allocation5 [shape = 'u8[4096]{0}', space=vmem, size = 0x1000, scoped, tag = 'input window, operand 1, single buffered']
    #allocation6 [shape = 's32[1]{0}', space=sflag, size = 0x4, scoped, tag = 'scoped memory for tpu_custom_call.1']
    #allocation7 [shape = 'u8[12288]{0}', space=vmem, size = 0x3000, scoped, tag = 'input window, operand 2, single buffered']
    #allocation8 [shape = 'u8[4096]{0}', space=vmem, size = 0x1000, scoped, tag = 'input window, operand 3, single buffered']
    #allocation9 [shape = 's32[1]{0}', space=sflag, size = 0x4, scoped, tag = 'scoped memory for tpu_custom_call.1']
    #allocation10 [shape = 'u8[512]{0}', space=vmem, size = 0x400, scoped, tag = 'input window, operand 4, single buffered']
    #allocation11 [shape = 'u8[16384]{0}', space=vmem, size = 0x4000, scoped, tag = 'input window, operand 5, single buffered']
    #allocation12 [shape = 's32[1]{0}', space=sflag, size = 0x4, scoped, tag = 'scoped memory for tpu_custom_call.1']
    #allocation13 [shape = 'u8[512]{0}', space=vmem, size = 0x400, scoped, tag = 'input window, operand 6, single buffered']
    #allocation14 [shape = 'u8[32768]{0}', space=vmem, size = 0x8000, scoped, tag = 'input window, operand 7, single buffered']
    #allocation15 [shape = 's32[1]{0}', space=sflag, size = 0x4, scoped, tag = 'scoped memory for tpu_custom_call.1']
    #allocation16 [shape = 'u8[1024]{0}', space=vmem, size = 0x400, scoped, tag = 'input window, operand 8, single buffered']
    #allocation17 [shape = 'u8[4096]{0}', space=vmem, size = 0x1000, scoped, tag = 'output window, operand 0, single buffered']
    %15 = vsyncpa [#allocation3], 0
    %16 = vsyncpa [#allocation6], 0
    %17 = vsyncpa [#allocation9], 0
    %18 = vsyncpa [#allocation12], 0
    %19 = vsyncpa [#allocation15], 0
    %20 = vsyncpa [#allocation4], 0
    // Predicated region
    $region2: #{tpu_custom_call.1} parent=1 // pred_check
      _
    $region3: #{tpu_custom_call.1} parent=1 // pred_check_branch
      %22 = sbr.rel (0) target = $region5
    $region4: #{tpu_custom_call.1} parent=1 // pred_region
      %24 = vsyncadd [#allocation3], 0
      %s26 = sshll.u32 %s0, 4
      %s27 = int_to_ptr.hbm [resolvable:$true] %s26
      %s28 = sshll.u32 [#allocation2], 4
      %s29 = int_to_ptr.vmem [resolvable:$true] %s28
      %31 = dma.hbm_to_vmem [thread:$0]  %s27, 128, %s29, [#allocation3]
    $region5: #{tpu_custom_call.1} parent=1 // pred_fallthru
      _
    // Predicated region
    $region6: #{tpu_custom_call.1} parent=1 // pred_check
      _
    $region7: #{tpu_custom_call.1} parent=1 // pred_check_branch
      %33 = sbr.rel (0) target = $region9
    $region8: #{tpu_custom_call.1} parent=1 // pred_region
      %35 = vsyncadd [#allocation6], 0
      %s37 = sshll.u32 %s1, 4
      %s38 = int_to_ptr.hbm [resolvable:$true] %s37
      %s39 = sshll.u32 [#allocation5], 4
      %s40 = int_to_ptr.vmem [resolvable:$true] %s39
      %42 = dma.hbm_to_vmem [thread:$0]  %s38, 128, %s40, [#allocation6]
    $region9: #{tpu_custom_call.1} parent=1 // pred_fallthru
      _
    // Predicated region
    $region10: #{tpu_custom_call.1} parent=1 // pred_check
      _
    $region11: #{tpu_custom_call.1} parent=1 // pred_check_branch
      %44 = sbr.rel (0) target = $region13
    $region12: #{tpu_custom_call.1} parent=1 // pred_region
      %46 = vsyncadd [#allocation6], 0
      %s47 = sshll.u32 %s2, 4
      %s48 = int_to_ptr.hbm [resolvable:$true] %s47
      %s49 = sshll.u32 [#allocation7], 4
      %s50 = int_to_ptr.vmem [resolvable:$true] %s49
      %55 = dma.hbm_to_vmem [thread:$0]  %s48, 384, %s50, [#allocation6], 128, 128, 8
    $region13: #{tpu_custom_call.1} parent=1 // pred_fallthru
      _
    // Predicated region
    $region14: #{tpu_custom_call.1} parent=1 // pred_check
      _
    $region15: #{tpu_custom_call.1} parent=1 // pred_check_branch
      %57 = sbr.rel (0) target = $region17
    $region16: #{tpu_custom_call.1} parent=1 // pred_region
      %59 = vsyncadd [#allocation9], 0
      %s61 = sshll.u32 %s3, 4
      %s62 = int_to_ptr.hbm [resolvable:$true] %s61
      %s63 = sshll.u32 [#allocation8], 4
      %s64 = int_to_ptr.vmem [resolvable:$true] %s63
      %66 = dma.hbm_to_vmem [thread:$0]  %s62, 128, %s64, [#allocation9]
    $region17: #{tpu_custom_call.1} parent=1 // pred_fallthru
      _
    // Predicated region
    $region18: #{tpu_custom_call.1} parent=1 // pred_check
      _
    $region19: #{tpu_custom_call.1} parent=1 // pred_check_branch
      %68 = sbr.rel (0) target = $region21
    $region20: #{tpu_custom_call.1} parent=1 // pred_region
      %70 = vsyncadd [#allocation9], 0
      %s72 = sshll.u32 %s4, 4
      %s73 = int_to_ptr.hbm [resolvable:$true] %s72
      %s74 = sshll.u32 [#allocation10], 4
      %s75 = int_to_ptr.vmem [resolvable:$true] %s74
      %77 = dma.hbm_to_vmem [thread:$0]  %s73, 16, %s75, [#allocation9]
    $region21: #{tpu_custom_call.1} parent=1 // pred_fallthru
      _
    // Predicated region
    $region22: #{tpu_custom_call.1} parent=1 // pred_check
      _
    $region23: #{tpu_custom_call.1} parent=1 // pred_check_branch
      %79 = sbr.rel (0) target = $region25
    $region24: #{tpu_custom_call.1} parent=1 // pred_region
      %81 = vsyncadd [#allocation12], 0
      %s82 = sshll.u32 %s5, 4
      %s83 = int_to_ptr.hbm [resolvable:$true] %s82
      %s84 = sshll.u32 [#allocation11], 4
      %s85 = int_to_ptr.vmem [resolvable:$true] %s84
      %90 = dma.hbm_to_vmem [thread:$0]  %s83, 512, %s85, [#allocation12], 128, 128, 8
    $region25: #{tpu_custom_call.1} parent=1 // pred_fallthru
      _
    // Predicated region
    $region26: #{tpu_custom_call.1} parent=1 // pred_check
      _
    $region27: #{tpu_custom_call.1} parent=1 // pred_check_branch
      %92 = sbr.rel (0) target = $region29
    $region28: #{tpu_custom_call.1} parent=1 // pred_region
      %94 = vsyncadd [#allocation12], 0
      %s96 = sshll.u32 %s6, 4
      %s97 = int_to_ptr.hbm [resolvable:$true] %s96
      %s98 = sshll.u32 [#allocation13], 4
      %s99 = int_to_ptr.vmem [resolvable:$true] %s98
      %101 = dma.hbm_to_vmem [thread:$0]  %s97, 16, %s99, [#allocation12]
    $region29: #{tpu_custom_call.1} parent=1 // pred_fallthru
      _
    // Predicated region
    $region30: #{tpu_custom_call.1} parent=1 // pred_check
      _
    $region31: #{tpu_custom_call.1} parent=1 // pred_check_branch
      %103 = sbr.rel (0) target = $region33
    $region32: #{tpu_custom_call.1} parent=1 // pred_region
      %105 = vsyncadd [#allocation15], 0
      %s106 = sshll.u32 %s7, 4
      %s107 = int_to_ptr.hbm [resolvable:$true] %s106
      %s108 = sshll.u32 [#allocation14], 4
      %s109 = int_to_ptr.vmem [resolvable:$true] %s108
      %114 = dma.hbm_to_vmem [thread:$0]  %s107, 1024, %s109, [#allocation15], 256, 256, 16
    $region33: #{tpu_custom_call.1} parent=1 // pred_fallthru
      _
    // Predicated region
    $region34: #{tpu_custom_call.1} parent=1 // pred_check
      _
    $region35: #{tpu_custom_call.1} parent=1 // pred_check_branch
      %116 = sbr.rel (0) target = $region37
    $region36: #{tpu_custom_call.1} parent=1 // pred_region
      %118 = vsyncadd [#allocation15], 0
      %s120 = sshll.u32 %s8, 4
      %s121 = int_to_ptr.hbm [resolvable:$true] %s120
      %s122 = sshll.u32 [#allocation16], 4
      %s123 = int_to_ptr.vmem [resolvable:$true] %s122
      %125 = dma.hbm_to_vmem [thread:$0]  %s121, 32, %s123, [#allocation15]
    $region37: #{tpu_custom_call.1} parent=1 // pred_fallthru
      _
    // Predicated region
    $region38: #{tpu_custom_call.1} parent=1 // pred_check
      _
    $region39: #{tpu_custom_call.1} parent=1 // pred_check_branch
      %127 = sbr.rel (0) target = $region41
    $region40: #{tpu_custom_call.1} parent=1 // pred_region
      _
    $region41: #{tpu_custom_call.1} parent=1 // pred_fallthru
      _
    // Predicated region
    $region42: #{tpu_custom_call.1} parent=1 // pred_check
      _
    $region43: #{tpu_custom_call.1} parent=1 // pred_check_branch
      %129 = sbr.rel (0) target = $region45
    $region44: #{tpu_custom_call.1} parent=1 // pred_region
      %131 = dma.done [#allocation3], 128
    $region45: #{tpu_custom_call.1} parent=1 // pred_fallthru
      _
    // Predicated region
    $region46: #{tpu_custom_call.1} parent=1 // pred_check
      _
    $region47: #{tpu_custom_call.1} parent=1 // pred_check_branch
      %133 = sbr.rel (0) target = $region49
    $region48: #{tpu_custom_call.1} parent=1 // pred_region
      %135 = dma.done [#allocation6], 128
    $region49: #{tpu_custom_call.1} parent=1 // pred_fallthru
      _
    // Predicated region
    $region50: #{tpu_custom_call.1} parent=1 // pred_check
      _
    $region51: #{tpu_custom_call.1} parent=1 // pred_check_branch
      %137 = sbr.rel (0) target = $region53
    $region52: #{tpu_custom_call.1} parent=1 // pred_region
      %139 = dma.done [#allocation6], 384
    $region53: #{tpu_custom_call.1} parent=1 // pred_fallthru
      _
    // Predicated region
    $region54: #{tpu_custom_call.1} parent=1 // pred_check
      _
    $region55: #{tpu_custom_call.1} parent=1 // pred_check_branch
      %141 = sbr.rel (0) target = $region57
    $region56: #{tpu_custom_call.1} parent=1 // pred_region
      %143 = dma.done [#allocation9], 128
    $region57: #{tpu_custom_call.1} parent=1 // pred_fallthru
      _
    // Predicated region
    $region58: #{tpu_custom_call.1} parent=1 // pred_check
      _
    $region59: #{tpu_custom_call.1} parent=1 // pred_check_branch
      %145 = sbr.rel (0) target = $region61
    $region60: #{tpu_custom_call.1} parent=1 // pred_region
      %147 = dma.done [#allocation9], 16
    $region61: #{tpu_custom_call.1} parent=1 // pred_fallthru
      _
    // Predicated region
    $region62: #{tpu_custom_call.1} parent=1 // pred_check
      _
    $region63: #{tpu_custom_call.1} parent=1 // pred_check_branch
      %149 = sbr.rel (0) target = $region65
    $region64: #{tpu_custom_call.1} parent=1 // pred_region
      %151 = dma.done [#allocation12], 512
    $region65: #{tpu_custom_call.1} parent=1 // pred_fallthru
      _
    // Predicated region
    $region66: #{tpu_custom_call.1} parent=1 // pred_check
      _
    $region67: #{tpu_custom_call.1} parent=1 // pred_check_branch
      %153 = sbr.rel (0) target = $region69
    $region68: #{tpu_custom_call.1} parent=1 // pred_region
      %155 = dma.done [#allocation12], 16
    $region69: #{tpu_custom_call.1} parent=1 // pred_fallthru
      _
    // Predicated region
    $region70: #{tpu_custom_call.1} parent=1 // pred_check
      _
    $region71: #{tpu_custom_call.1} parent=1 // pred_check_branch
      %157 = sbr.rel (0) target = $region73
    $region72: #{tpu_custom_call.1} parent=1 // pred_region
      %159 = dma.done [#allocation15], 1024
    $region73: #{tpu_custom_call.1} parent=1 // pred_fallthru
      _
    // Predicated region
    $region74: #{tpu_custom_call.1} parent=1 // pred_check
      _
    $region75: #{tpu_custom_call.1} parent=1 // pred_check_branch
      %161 = sbr.rel (0) target = $region77
    $region76: #{tpu_custom_call.1} parent=1 // pred_region
      %163 = dma.done [#allocation15], 32
    $region77: #{tpu_custom_call.1} parent=1 // pred_fallthru
      _
    %v164 = vld [vmem:[%s9] sm:$0xff]
    %v165 = vld [vmem:[#allocation2] sm:$0xff]
    %v166 = vld [vmem:[#allocation7] sm:$0xff]
    %v167 = vld [vmem:[#allocation7 + $0x8] sm:$0xff]
    %v168 = vld [vmem:[#allocation7 + $0x10] sm:$0xff]
    %v169 = vld [vmem:[#allocation5] sm:$0xff]
    %v170 = vld [vmem:[#allocation8] sm:$0xff]
    %vm171 = vcmask 64512
    %v173 = vsel %vm171, %v169, 0
    %175 = vmatpush.msra.mxu0 0.0
    %176 = vmatpush.msra.mxu0 0.0
    %177 = vmatpush.msra.mxu0 0.0
    %178 = vmatpush.msra.mxu0 0.0
    %179 = vmatpush.msra.mxu0 0.0
    %180 = vmatpush.msra.mxu0 0.0
    %181 = vmatpush.msra.mxu0 0.0
    %182 = vmatpush.msra.mxu0 0.0
    %183 = vmatpush.msra.mxu0 0.0
    %184 = vmatpush.msra.mxu0 0.0
    %185 = vmatpush.msra.mxu0 0.0
    %186 = vmatpush.msra.mxu0 0.0
    %187 = vmatpush.msra.mxu0 0.0
    %188 = vmatpush.msra.mxu0 0.0
    %189 = vmatpush.msra.mxu0 0.0
    %190 = vmatpush.msra.mxu0 %v170
    %191 = vmatmul.f32.gmra.mxu0 %v173
    %v192 = vpop.f32.mrf.mxu0
    %v193 = vadd.f32 0.0, %v192
    %194 = vdwg.mxu0
    %vm195 = vcmask 195584
    %v197 = vsel %vm195, %v165, 0
    %199 = vmatpush.msra.mxu0 0.0
    %200 = vmatpush.msra.mxu0 0.0
    %201 = vmatpush.msra.mxu0 0.0
    %202 = vmatpush.msra.mxu0 0.0
    %203 = vmatpush.msra.mxu0 0.0
    %204 = vmatpush.msra.mxu0 0.0
    %205 = vmatpush.msra.mxu0 0.0
    %206 = vmatpush.msra.mxu0 0.0
    %207 = vmatpush.msra.mxu0 0.0
    %208 = vmatpush.msra.mxu0 0.0
    %209 = vmatpush.msra.mxu0 0.0
    %210 = vmatpush.msra.mxu0 0.0
    %211 = vmatpush.msra.mxu0 0.0
    %212 = vmatpush.msra.mxu0 %v168
    %213 = vmatpush.msra.mxu0 %v167
    %214 = vmatpush.msra.mxu0 %v166
    %215 = vmatmul.f32.gmra.mxu0 %v197
    %v216 = vpop.f32.mrf.mxu0
    %v217 = vadd.f32 %v193, %v216
    %218 = vdwg.mxu0
    %v219 = vld [vmem:[#allocation10] sm:$0x1]
    %v221 = vperm.slane %v219, 0
    %v223 = vadd.f32 %v217, %v221
    %v224 = vmax.f32 %v223, 0.0
    %v225 = vld [vmem:[#allocation11] sm:$0xff]
    %v226 = vld [vmem:[#allocation11 + $0x8] sm:$0xff]
    %v227 = vld [vmem:[#allocation11 + $0x10] sm:$0xff]
    %v228 = vld [vmem:[#allocation11 + $0x18] sm:$0xff]
    %v229 = vld [vmem:[#allocation13] sm:$0x1]
    %v231 = vperm.slane %v229, 0
    %vm233 = vcmask 261120
    %v235 = vsel %vm233, %v224, 0
    %237 = vmatpush.msra.mxu0 0.0
    %238 = vmatpush.msra.mxu0 0.0
    %239 = vmatpush.msra.mxu0 0.0
    %240 = vmatpush.msra.mxu0 0.0
    %241 = vmatpush.msra.mxu0 0.0
    %242 = vmatpush.msra.mxu0 0.0
    %243 = vmatpush.msra.mxu0 0.0
    %244 = vmatpush.msra.mxu0 0.0
    %245 = vmatpush.msra.mxu0 0.0
    %246 = vmatpush.msra.mxu0 0.0
    %247 = vmatpush.msra.mxu0 0.0
    %248 = vmatpush.msra.mxu0 0.0
    %249 = vmatpush.msra.mxu0 %v228
    %250 = vmatpush.msra.mxu0 %v227
    %251 = vmatpush.msra.mxu0 %v226
    %252 = vmatpush.msra.mxu0 %v225
    %253 = vmatmul.f32.gmra.mxu0 %v235
    %v254 = vpop.f32.mrf.mxu0
    %v255 = vadd.f32 %v231, %v254
    %256 = vdwg.mxu0
    %v257 = vmax.f32 %v255, 0.0
    %v258 = vld [vmem:[#allocation14] sm:$0xff]
    %v259 = vld [vmem:[#allocation14 + $0x8] sm:$0xff]
    %v260 = vld [vmem:[#allocation14 + $0x10] sm:$0xff]
    %v261 = vld [vmem:[#allocation14 + $0x18] sm:$0xff]
    %v262 = vld [vmem:[#allocation14 + $0x20] sm:$0xff]
    %v263 = vld [vmem:[#allocation14 + $0x28] sm:$0xff]
    %v264 = vld [vmem:[#allocation14 + $0x30] sm:$0xff]
    %v265 = vld [vmem:[#allocation14 + $0x38] sm:$0xff]
    %v266 = vld [vmem:[#allocation16] sm:$0x3]
    %v268 = vperm.slane %v266, 0
    %v269 = vperm.slane %v266, 1
    %v273 = vsel %vm233, %v257, 0
    %275 = vmatpush.msra.mxu0 0.0
    %276 = vmatpush.msra.mxu0 0.0
    %277 = vmatpush.msra.mxu0 0.0
    %278 = vmatpush.msra.mxu0 0.0
    %279 = vmatpush.msra.mxu0 0.0
    %280 = vmatpush.msra.mxu0 0.0
    %281 = vmatpush.msra.mxu0 0.0
    %282 = vmatpush.msra.mxu0 0.0
    %283 = vmatpush.msra.mxu0 0.0
    %284 = vmatpush.msra.mxu0 0.0
    %285 = vmatpush.msra.mxu0 0.0
    %286 = vmatpush.msra.mxu0 0.0
    %287 = vmatpush.msra.mxu0 %v264
    %288 = vmatpush.msra.mxu0 %v262
    %289 = vmatpush.msra.mxu0 %v260
    %290 = vmatpush.msra.mxu0 %v258
    %291 = vmatmul.f32.gmra.mxu0 %v273
    %v292 = vpop.f32.mrf.mxu0
    %v293 = vadd.f32 %v268, %v292
    %294 = vdwg.mxu0
    %295 = vmatpush.msra.mxu0 0.0
    %296 = vmatpush.msra.mxu0 0.0
    %297 = vmatpush.msra.mxu0 0.0
    %298 = vmatpush.msra.mxu0 0.0
    %299 = vmatpush.msra.mxu0 0.0
    %300 = vmatpush.msra.mxu0 0.0
    %301 = vmatpush.msra.mxu0 0.0
    %302 = vmatpush.msra.mxu0 0.0
    %303 = vmatpush.msra.mxu0 0.0
    %304 = vmatpush.msra.mxu0 0.0
    %305 = vmatpush.msra.mxu0 0.0
    %306 = vmatpush.msra.mxu0 0.0
    %307 = vmatpush.msra.mxu0 %v265
    %308 = vmatpush.msra.mxu0 %v263
    %309 = vmatpush.msra.mxu0 %v261
    %310 = vmatpush.msra.mxu0 %v259
    %311 = vmatmul.f32.gmra.mxu0 %v273
    %v312 = vpop.f32.mrf.mxu0
    %v313 = vadd.f32 %v269, %v312
    %314 = vdwg.mxu0
    %v315 = vmax.f32 %v313, -20.0
    %v316 = vmin.f32 %v315, 2.0
    %v317 = vmul.f32 %v316, 1.442695
    %v318 = vpow.pop %v317
    %v319 = vmul.f32 %v318, %v164
    %v320 = vadd.f32 %v293, %v319
    %v321 = vlaneseq
    %v322 = vand.u32 %v321, 127
    %vm323 = vcmp.lt.s32.totalorder %v322, 8
    %v324 = vtanh.pop %v320
    %v325 = vmul.f32 %v164, -0.5
    %v326 = vmul.f32 %v325, %v164
    %v327 = vsub.f32 %v326, %v316
    %v328 = vsub.f32 %v327, 0.9189385
    %v329 = vmul.f32 %v320, -2.0
    %v330 = vmax.f32 %v329, 0.0
    %v331 = vand.u32 2147483647, %v329
    %v332 = vsub.f32 0.0, %v331
    %v333 = vmul.f32 %v332, 1.442695
    %v334 = vpow.pop %v333
    %v335 = vadd.f32 %v334, 1.0
    %v336 = vlog2.pop %v335
    %v337 = vmul.f32 %v336, 0.6931472
    %v338 = vmul.f32 -0.5, %v334
    %v339 = vadd.f32 %v338, 1.0
    %v340 = vmul.f32 %v339, %v334
    %v341 = vand.u32 2147483647, %v334
    %vm342 = vcmp.lt.f32.partialorder %v341, 0.0004427343
    %v343 = vsel %vm342, %v340, %v337
    %v344 = vadd.f32 %v330, %v343
    %v345 = vsub.f32 0.6931472, %v320
    %v346 = vsub.f32 %v345, %v344
    %v347 = vmul.f32 %v346, 2.0
    %v348 = vsub.f32 %v328, %v347
    %v349 = vsel %vm323, %v348, 0.0
    %350 = vadd.xlane.f32.xlu0 %v349
    %v351 = vpop.xlane.xlu0 %350
    %vm352 = vcmp.eq.s32.totalorder %v322, 8
    %v353 = vsel %vm352, %v351, 0.0
    %v354 = vsel %vm323, %v324, %v353
    %355 = vst [vmem:[#allocation17] sm:$0xff] %v354
    // Predicated region
    $region78: #{tpu_custom_call.1} parent=1 // pred_check
      _
    $region79: #{tpu_custom_call.1} parent=1 // pred_check_branch
      %357 = sbr.rel (0) target = $region81
    $region80: #{tpu_custom_call.1} parent=1 // pred_region
      %359 = vsyncadd [#allocation4], 0
      %s361 = sshll.u32 [#allocation17], 4
      %s362 = int_to_ptr.vmem [resolvable:$true] %s361
      %s363 = sshll.u32 %s10, 4
      %s364 = int_to_ptr.hbm [resolvable:$true] %s363
      %366 = dma.vmem_to_hbm [thread:$0]  %s362, 128, %s364, [#allocation4]
    $region81: #{tpu_custom_call.1} parent=1 // pred_fallthru
      _
    // Predicated region
    $region82: #{tpu_custom_call.1} parent=1 // pred_check
      _
    $region83: #{tpu_custom_call.1} parent=1 // pred_check_branch
      %368 = sbr.rel (0) target = $region85
    $region84: #{tpu_custom_call.1} parent=1 // pred_region
      %370 = dma.done [#allocation4], 128
    $region85: #{tpu_custom_call.1} parent=1 // pred_fallthru
      _
    %371 = vsyncpa [#allocation3], 1
    %372 = vsyncpa [#allocation6], 1
    %373 = vsyncpa [#allocation9], 1
    %374 = vsyncpa [#allocation12], 1
    %375 = vsyncpa [#allocation15], 1
    %376 = vsyncpa [#allocation4], 1

</llo_original>
